<compile_context>
chip_gen: v6e
topology: v6e:2x2x1
jax: 0.10.0
libtpu: 0.0.40
codegen_flags: <defaults>
</compile_context>

<pallas_src>
import numpy as np
import jax
import jax.numpy as jnp
from jax.experimental import pallas as pl
from jax.experimental.pallas import tpu as pltpu


def _clade_out_kernel(x_ref, w_ref, gamma_ref, beta_ref):
    # x_ref:     (C_in,      TILE_PIX)  channel-major pixel tile
    # w_ref:     (2*C_out,   C_in)      fused [gamma; beta] 1x1-conv weights
    # gamma_ref: (C_out,     TILE_PIX)
    # beta_ref:  (C_out,     TILE_PIX)
    x = x_ref[...]
    w = w_ref[...]
    c_in = x.shape[0]
    c_out = gamma_ref.shape[0]

    # y[o, p] = sum_k w[o, k] * x[k, p] as a sum of broadcast outer products:
    # VPU FMAs only, no MXU for a K=4 contraction.
    acc = w[:, 0:1] * x[0:1, :]
    for k in range(1, c_in):
        acc = acc + w[:, k:k + 1] * x[k:k + 1, :]

    gamma_ref[...] = acc[:c_out, :] + 1.0
    beta_ref[...] = acc[c_out:, :]


def clade_out(segmap, w_gamma, w_beta, *, tile_pix=8192):
    """segmap: (N, C_in, H, W) float32 (NCHW, like PyTorch).
    w_gamma, w_beta: (C_out, C_in) 1x1-conv weights (kernel dims squeezed).
    Returns (gamma + 1, beta), each (N, C_out, H, W) float32."""
    segmap = segmap.astype(jnp.float32)
    n, c_in, h, w = segmap.shape
    c_out = w_gamma.shape[0]
    hw = h * w

    # Free reshape: NCHW is row-major, so (N, C_in, H*W) needs no data movement.
    x = segmap.reshape(n, c_in, hw)

    # Fuse gamma/beta weights into one channel-mix matrix (2*C_out, C_in).
    w_full = jnp.concatenate(
        [jnp.asarray(w_gamma, jnp.float32), jnp.asarray(w_beta, jnp.float32)],
        axis=0,
    )

    # Pixel-tile selection: full extent for small maps (no 128-divisibility
    # requirement then); otherwise a multiple-of-128 tile, padding only as a
    # last-resort fallback.
    if hw <= tile_pix:
        tp, hw_pad = hw, hw
    elif hw % tile_pix == 0:
        tp, hw_pad = tile_pix, hw
    else:
        tp = tile_pix
        hw_pad = pl.cdiv(hw, tile_pix) * tile_pix
        x = jnp.pad(x, ((0, 0), (0, 0), (0, hw_pad - hw)))

    grid = (n, hw_pad // tp)

    gamma_flat, beta_flat = pl.pallas_call(
        _clade_out_kernel,
        out_shape=(
            jax.ShapeDtypeStruct((n, c_out, hw_pad), jnp.float32),
            jax.ShapeDtypeStruct((n, c_out, hw_pad), jnp.float32),
        ),
        grid_spec=pltpu.PrefetchScalarGridSpec(
            num_scalar_prefetch=0,
            grid=grid,
            in_specs=[
                # Batch dim squeezed out of the kernel ref; pixels on lanes.
                pl.BlockSpec((None, c_in, tp), lambda b, i: (b, 0, i)),
                # Tiny fused weights, kept resident across the whole grid.
                pl.BlockSpec((2 * c_out, c_in), lambda b, i: (0, 0)),
            ],
            out_specs=[
                pl.BlockSpec((None, c_out, tp), lambda b, i: (b, 0, i)),
                pl.BlockSpec((None, c_out, tp), lambda b, i: (b, 0, i)),
            ],
        ),
        compiler_params=pltpu.CompilerParams(
            dimension_semantics=("parallel", "parallel"),
        ),
    )(x, w_full)

    def unflatten(y):
        return y[:, :, :hw].reshape(n, c_out, h, w)

    return unflatten(gamma_flat), unflatten(beta_flat)


if __name__ == "__main__":
    semantic_nc = 4     # C_in
    num_features = 8    # C_out
    N, H, W = 2, 16, 16

    key = jax.random.PRNGKey(0)
    segmap = jax.random.normal(key, (N, semantic_nc, H, W), dtype=jnp.float32)

    # Deterministic parameter init per the module's __init__:
    #   gamma weight = sqrt(semantic_nc), beta weight = 0, no bias.
    w_gamma = jnp.full((num_features, semantic_nc), np.sqrt(semantic_nc), jnp.float32)
    w_beta = jnp.zeros((num_features, semantic_nc), jnp.float32)

    gamma_p1, beta = clade_out(segmap, w_gamma, w_beta)
    gamma_p1 = jax.block_until_ready(gamma_p1)
    beta = jax.block_until_ready(beta)

    # Reference check in plain JAX (1x1 conv == per-pixel channel matmul).
    x_flat = jnp.transpose(segmap, (0, 2, 3, 1)).reshape(-1, semantic_nc)
    ref_gamma = (x_flat @ w_gamma.T + 1.0).reshape(N, H, W, num_features)
    ref_gamma = jnp.transpose(ref_gamma, (0, 3, 1, 2))
    ref_beta = (x_flat @ w_beta.T).reshape(N, H, W, num_features)
    ref_beta = jnp.transpose(ref_beta, (0, 3, 1, 2))

    assert gamma_p1.shape == (N, num_features, H, W)
    assert beta.shape == (N, num_features, H, W)
    np.testing.assert_allclose(np.asarray(gamma_p1), np.asarray(ref_gamma),
                               rtol=1e-5, atol=1e-5)
    np.testing.assert_allclose(np.asarray(beta), np.asarray(ref_beta),
                               rtol=1e-5, atol=1e-5)

    print("KERNEL_OK")
</pallas_src>

<mosaic_0001>
module attributes {stable_mosaic.version = 11 : i64} {
  func.func @_clade_out_kernel(%arg0: i32, %arg1: i32, %arg2: memref<1x4x256xf32, #tpu.memory_space<vmem>>, %arg3: memref<16x4xf32, #tpu.memory_space<vmem>>, %arg4: memref<1x8x256xf32, #tpu.memory_space<vmem>>, %arg5: memref<1x8x256xf32, #tpu.memory_space<vmem>>) attributes {dimension_semantics = [#tpu.dimension_semantics<parallel>, #tpu.dimension_semantics<parallel>], iteration_bounds = array<i64: 2, 1>, scalar_prefetch = 0 : i64, scratch_operands = 0 : i64, tpu.core_type = #tpu.core_type<tc>, window_params = [{transform_indices = @transform_0, window_bounds = array<i64: 1, 4, 256>}, {pipeline_mode = #tpu.pipeline_mode<synchronous>, transform_indices = @transform_1, window_bounds = array<i64: 16, 4>}, {transform_indices = @transform_2, window_bounds = array<i64: 1, 8, 256>}, {transform_indices = @transform_3, window_bounds = array<i64: 1, 8, 256>}]} {
    %c0 = arith.constant 0 : index
    %c0_0 = arith.constant 0 : index
    %c0_1 = arith.constant 0 : index
    %0 = vector.load %arg2[%c0, %c0_0, %c0_1] : memref<1x4x256xf32, #tpu.memory_space<vmem>>, vector<1x4x256xf32>
    %1 = vector.shape_cast %0 : vector<1x4x256xf32> to vector<4x256xf32>
    %c0_2 = arith.constant 0 : index
    %c0_3 = arith.constant 0 : index
    %2 = vector.load %arg3[%c0_2, %c0_3] : memref<16x4xf32, #tpu.memory_space<vmem>>, vector<16x4xf32>
    %3 = vector.extract_strided_slice %2 {offsets = [0, 0], sizes = [16, 1], strides = [1, 1]} : vector<16x4xf32> to vector<16x1xf32>
    %4 = vector.extract_strided_slice %1 {offsets = [0, 0], sizes = [1, 256], strides = [1, 1]} : vector<4x256xf32> to vector<1x256xf32>
    %5 = vector.broadcast %3 : vector<16x1xf32> to vector<16x256xf32>
    %6 = vector.broadcast %4 : vector<1x256xf32> to vector<16x256xf32>
    %7 = arith.mulf %5, %6 : vector<16x256xf32>
    %8 = vector.extract_strided_slice %2 {offsets = [0, 1], sizes = [16, 1], strides = [1, 1]} : vector<16x4xf32> to vector<16x1xf32>
    %9 = vector.extract_strided_slice %1 {offsets = [1, 0], sizes = [1, 256], strides = [1, 1]} : vector<4x256xf32> to vector<1x256xf32>
    %10 = vector.broadcast %8 : vector<16x1xf32> to vector<16x256xf32>
    %11 = vector.broadcast %9 : vector<1x256xf32> to vector<16x256xf32>
    %12 = arith.mulf %10, %11 : vector<16x256xf32>
    %13 = arith.addf %7, %12 : vector<16x256xf32>
    %14 = vector.extract_strided_slice %2 {offsets = [0, 2], sizes = [16, 1], strides = [1, 1]} : vector<16x4xf32> to vector<16x1xf32>
    %15 = vector.extract_strided_slice %1 {offsets = [2, 0], sizes = [1, 256], strides = [1, 1]} : vector<4x256xf32> to vector<1x256xf32>
    %16 = vector.broadcast %14 : vector<16x1xf32> to vector<16x256xf32>
    %17 = vector.broadcast %15 : vector<1x256xf32> to vector<16x256xf32>
    %18 = arith.mulf %16, %17 : vector<16x256xf32>
    %19 = arith.addf %13, %18 : vector<16x256xf32>
    %20 = vector.extract_strided_slice %2 {offsets = [0, 3], sizes = [16, 1], strides = [1, 1]} : vector<16x4xf32> to vector<16x1xf32>
    %21 = vector.extract_strided_slice %1 {offsets = [3, 0], sizes = [1, 256], strides = [1, 1]} : vector<4x256xf32> to vector<1x256xf32>
    %22 = vector.broadcast %20 : vector<16x1xf32> to vector<16x256xf32>
    %23 = vector.broadcast %21 : vector<1x256xf32> to vector<16x256xf32>
    %24 = arith.mulf %22, %23 : vector<16x256xf32>
    %25 = arith.addf %19, %24 : vector<16x256xf32>
    %26 = vector.extract_strided_slice %25 {offsets = [0, 0], sizes = [8, 256], strides = [1, 1]} : vector<16x256xf32> to vector<8x256xf32>
    %cst = arith.constant 1.000000e+00 : f32
    %27 = vector.broadcast %cst : f32 to vector<8x256xf32>
    %28 = arith.addf %26, %27 : vector<8x256xf32>
    %c0_4 = arith.constant 0 : index
    %c0_5 = arith.constant 0 : index
    %c0_6 = arith.constant 0 : index
    %29 = vector.load %arg4[%c0_4, %c0_5, %c0_6] : memref<1x8x256xf32, #tpu.memory_space<vmem>>, vector<1x8x256xf32>
    %30 = vector.shape_cast %29 : vector<1x8x256xf32> to vector<8x256xf32>
    %31 = vector.shape_cast %28 : vector<8x256xf32> to vector<1x8x256xf32>
    tpu.vector_store %arg4[%c0_4, %c0_5, %c0_6], %31 {strides = array<i32>} : memref<1x8x256xf32, #tpu.memory_space<vmem>>, vector<1x8x256xf32>,
    %32 = vector.extract_strided_slice %25 {offsets = [8, 0], sizes = [8, 256], strides = [1, 1]} : vector<16x256xf32> to vector<8x256xf32>
    %c0_7 = arith.constant 0 : index
    %c0_8 = arith.constant 0 : index
    %c0_9 = arith.constant 0 : index
    %33 = vector.load %arg5[%c0_7, %c0_8, %c0_9] : memref<1x8x256xf32, #tpu.memory_space<vmem>>, vector<1x8x256xf32>
    %34 = vector.shape_cast %33 : vector<1x8x256xf32> to vector<8x256xf32>
    %35 = vector.shape_cast %32 : vector<8x256xf32> to vector<1x8x256xf32>
    tpu.vector_store %arg5[%c0_7, %c0_8, %c0_9], %35 {strides = array<i32>} : memref<1x8x256xf32, #tpu.memory_space<vmem>>, vector<1x8x256xf32>,
    return
  }
  func.func @transform_0(%arg0: i32, %arg1: i32) -> (i32, i32, i32) {
    %c0_i32 = arith.constant 0 : i32
    %c0_i32_0 = arith.constant 0 : i32
    return %arg0, %c0_i32, %arg1 : i32, i32, i32
  }
  func.func @transform_1(%arg0: i32, %arg1: i32) -> (i32, i32) {
    %c0_i32 = arith.constant 0 : i32
    %c0_i32_0 = arith.constant 0 : i32
    %c0_i32_1 = arith.constant 0 : i32
    return %c0_i32, %c0_i32_0 : i32, i32
  }
  func.func @transform_2(%arg0: i32, %arg1: i32) -> (i32, i32, i32) {
    %c0_i32 = arith.constant 0 : i32
    %c0_i32_0 = arith.constant 0 : i32
    return %arg0, %c0_i32, %arg1 : i32, i32, i32
  }
  func.func @transform_3(%arg0: i32, %arg1: i32) -> (i32, i32, i32) {
    %c0_i32 = arith.constant 0 : i32
    %c0_i32_0 = arith.constant 0 : i32
    return %arg0, %c0_i32, %arg1 : i32, i32, i32
  }
}

</mosaic_0001>

<llo_original>
// kernel: tpu_custom_call.1
$region0: #{tpu_custom_call.1}
  #allocation0 [shape = 'u32[]', space=smem, size = 0x4, offset = 0x4, fixed_abs, tag = 'smem constant byte address 0x4 - core index']
  #allocation1 [shape = 'u32[144,128]{1,0:T(1,128)}', space=vmem, size = 0x12000, scoped, tag = 'internal scratch']
  %s0 = inlined_call_operand.vmem [shape: f32[2,4,256], index: 0, kind: input, shape index: {}]
  %s1 = inlined_call_operand.vmem [shape: f32[16,4], index: 1, kind: input, shape index: {}]
  %s2 = inlined_call_operand.hbm [shape: f32[2,8,256], index: 2, kind: output, shape index: {0}]
  %s3 = inlined_call_operand.hbm [shape: f32[2,8,256], index: 3, kind: output, shape index: {1}]
  %4 = xla_tuple %s2, %s3
  %s5 = sld [smem:[#allocation0]]
  $region49: #{tpu_custom_call.1} parent=0
    _
  %s7 = ssub.s32 1, %s5
  %s8 = scalar_select 0, %s7, %s5
  $region1: #{tpu_custom_call.1} parent=0
    #allocation2 [shape = 'u8[16384]{0}', space=vmem, size = 0x4000, scoped, tag = 'output window, operand 0']
    #allocation3 [shape = 's32[2]{0}', space=sflag, size = 0x8, scoped, tag = 'scoped memory for tpu_custom_call.1']
    #allocation4 [shape = 'u8[16384]{0}', space=vmem, size = 0x4000, scoped, tag = 'output window, operand 1']
    #allocation5 [shape = 's32[2]{0}', space=sflag, size = 0x8, scoped, tag = 'scoped memory for tpu_custom_call.1']
    %9 = vsyncpa [#allocation3], 0
    %s10 = scalar_lea.sflag [#allocation3], 1
    %11 = vsyncpa %s10, 0
    %12 = vsyncpa [#allocation5], 0
    %s13 = scalar_lea.sflag [#allocation5], 1
    %14 = vsyncpa %s13, 0
    loop: start=0, step=1, limit=4
    $region2: #{tpu_custom_call.1} parent=1 // loop_pre_header
      _
    $region3: #{tpu_custom_call.1} parent=1 // loop_header
      %s16 = sphi 0, %s20
      %p17 = scmp.ge.s32.totalorder %s16, 4
      %s23 = sphi 0, %s35
      %s24 = sphi 0, %s31
      %s25 = sphi 0, %s23
      %s26 = sphi 0, %s24
      %s27 = sphi 0, %s25
      %s28 = sphi 0, %s26
      %s40 = sphi 0, %s42
      %s43 = sphi 0, %s40
      %s44 = sphi 0, %s43
      %s60 = sphi 0, %s44
      %s64 = sphi 0, %s64
      %s66 = sphi 0, %s64
      %s67 = sphi 0, %s66
      %s81 = sphi 0, %s67
      %s89 = sphi 0, %s91
      %s92 = sphi 0, %s89
      %s93 = sphi 0, %s92
      %s109 = sphi 0, %s93
      %s117 = sphi 0, %s119
      %s120 = sphi 0, %s117
      %s121 = sphi 0, %s120
      %s137 = sphi 0, %s121
    $region4: #{tpu_custom_call.1} parent=1 // loop_header_branch
      %19 = sbr.rel (%p17) target = $region8
    $region5: #{tpu_custom_call.1} parent=1 // loop_body
      %s21 = ssub.s32 %s16, 1
      %s22 = ssub.s32 %s16, 2
      %s29 = sadd.s32 1, %s24
      %p30 = scmp.ge.s32.totalorder %s29, 1
      %s31 = scalar_select %p30, 0, %s29
      %s32 = sadd.s32 1, %s23
      %s33 = scalar_select %p30, %s32, %s23
      %p34 = scmp.ge.s32.totalorder %s33, 2
      %s35 = scalar_select %p34, 0, %s33
      %s36 = ssub.s32 %s23, %s35
      %s37 = ssub.s32 %s24, %s31
      %s38 = sor.u32 %s36, %s37
      %p39 = scmp.eq.s32.totalorder %s38, 0
      %s41 = sadd.s32 %s40, 1
      %s42 = scalar_select %p39, %s40, %s41
      %p45 = pneg %p39
      %p46 = scmp.eq.s32.totalorder %s16, 1
      %p47 = por %p45, %p46
      %p48 = scmp.ne.s32.totalorder %s40, %s43
      %p49 = scmp.eq.s32.totalorder %s16, 0
      %p50 = por %p48, %p49
      %p51 = scmp.ne.s32.totalorder %s40, %s43
      %p52 = scmp.eq.s32.totalorder %s21, 1
      %p53 = por %p51, %p52
      %p54 = scmp.ne.s32.totalorder %s43, %s44
      %p55 = scmp.eq.s32.totalorder %s21, 0
      %p56 = por %p54, %p55
      %p57 = scmp.ne.s32.totalorder %s43, %s44
      %p58 = scmp.eq.s32.totalorder %s22, 1
      %p59 = por %p57, %p58
      %p61 = scmp.ne.s32.totalorder %s44, %s60
      %p62 = scmp.eq.s32.totalorder %s22, 0
      %p63 = por %p61, %p62
      %s65 = sadd.s32 %s64, 1
      %p68 = scmp.eq.s32.totalorder %s16, 1
      %p69 = scmp.ne.s32.totalorder %s64, %s66
      %p70 = scmp.eq.s32.totalorder %s16, 0
      %p71 = por %p69, %p70
      %p72 = scmp.ne.s32.totalorder %s64, %s66
      %p73 = scmp.eq.s32.totalorder %s21, 1
      %p74 = por %p72, %p73
      %p75 = scmp.ne.s32.totalorder %s66, %s67
      %p76 = scmp.eq.s32.totalorder %s21, 0
      %p77 = por %p75, %p76
      %p78 = scmp.ne.s32.totalorder %s66, %s67
      %p79 = scmp.eq.s32.totalorder %s22, 1
      %p80 = por %p78, %p79
      %p82 = scmp.ne.s32.totalorder %s67, %s81
      %p83 = scmp.eq.s32.totalorder %s22, 0
      %p84 = por %p82, %p83
      %s85 = ssub.s32 %s23, %s35
      %s86 = ssub.s32 %s24, %s31
      %s87 = sor.u32 %s85, %s86
      %p88 = scmp.eq.s32.totalorder %s87, 0
      %s90 = sadd.s32 %s89, 1
      %s91 = scalar_select %p88, %s89, %s90
      %p94 = pneg %p88
      %p95 = scmp.eq.s32.totalorder %s16, 1
      %p96 = por %p94, %p95
      %p97 = scmp.ne.s32.totalorder %s89, %s92
      %p98 = scmp.eq.s32.totalorder %s16, 0
      %p99 = por %p97, %p98
      %p100 = scmp.ne.s32.totalorder %s89, %s92
      %p101 = scmp.eq.s32.totalorder %s21, 1
      %p102 = por %p100, %p101
      %p103 = scmp.ne.s32.totalorder %s92, %s93
      %p104 = scmp.eq.s32.totalorder %s21, 0
      %p105 = por %p103, %p104
      %p106 = scmp.ne.s32.totalorder %s92, %s93
      %p107 = scmp.eq.s32.totalorder %s22, 1
      %p108 = por %p106, %p107
      %p110 = scmp.ne.s32.totalorder %s93, %s109
      %p111 = scmp.eq.s32.totalorder %s22, 0
      %p112 = por %p110, %p111
      %s113 = ssub.s32 %s23, %s35
      %s114 = ssub.s32 %s24, %s31
      %s115 = sor.u32 %s113, %s114
      %p116 = scmp.eq.s32.totalorder %s115, 0
      %s118 = sadd.s32 %s117, 1
      %s119 = scalar_select %p116, %s117, %s118
      %p122 = pneg %p116
      %p123 = scmp.eq.s32.totalorder %s16, 1
      %p124 = por %p122, %p123
      %p125 = scmp.ne.s32.totalorder %s117, %s120
      %p126 = scmp.eq.s32.totalorder %s16, 0
      %p127 = por %p125, %p126
      %p128 = scmp.ne.s32.totalorder %s117, %s120
      %p129 = scmp.eq.s32.totalorder %s21, 1
      %p130 = por %p128, %p129
      %p131 = scmp.ne.s32.totalorder %s120, %s121
      %p132 = scmp.eq.s32.totalorder %s21, 0
      %p133 = por %p131, %p132
      %p134 = scmp.ne.s32.totalorder %s120, %s121
      %p135 = scmp.eq.s32.totalorder %s22, 1
      %p136 = por %p134, %p135
      %p138 = scmp.ne.s32.totalorder %s121, %s137
      %p139 = scmp.eq.s32.totalorder %s22, 0
      %p140 = por %p138, %p139
      %p141 = scmp.le.s32.totalorder 1, %s16
      %p142 = scmp.lt.s32.totalorder %s16, 3
      %p143 = pnand %p141, %p142
      %p144 = pneg %p143
      // Predicated region
      $region9: #{tpu_custom_call.1} parent=5 // pred_check
        _
      $region10: #{tpu_custom_call.1} parent=5 // pred_check_branch
        %146 = sbr.rel (%p143) target = $region12
      $region11: #{tpu_custom_call.1} parent=5 // pred_region
        %s147 = ssub.s32 %s16, 1
        // Predicated region
        $region13: #{tpu_custom_call.1} parent=11 // pred_check
          %p148 = pneg %p77
        $region14: #{tpu_custom_call.1} parent=11 // pred_check_branch
          %150 = sbr.rel (%p148) target = $region16
        $region15: #{tpu_custom_call.1} parent=11 // pred_region
          _
        $region16: #{tpu_custom_call.1} parent=11 // pred_fallthru
          _
      $region12: #{tpu_custom_call.1} parent=5 // pred_fallthru
        _
      %p151 = scmp.lt.s32.totalorder %s16, 2
      // Predicated region
      $region17: #{tpu_custom_call.1} parent=5 // pred_check
        %p152 = pneg %p151
      $region18: #{tpu_custom_call.1} parent=5 // pred_check_branch
        %154 = sbr.rel (%p152) target = $region20
      $region19: #{tpu_custom_call.1} parent=5 // pred_region
        // Predicated region
        $region21: #{tpu_custom_call.1} parent=19 // pred_check
          %p155 = pneg %p50
        $region22: #{tpu_custom_call.1} parent=19 // pred_check_branch
          %157 = sbr.rel (%p155) target = $region24
        $region23: #{tpu_custom_call.1} parent=19 // pred_region
          %s158 = smul.u32 2, %s24
          %p159 = scmp.lt.s32.totalorder %s23, 1
          %s160 = scalar_select %p159, %s23, 1
          %p161 = scmp.lt.s32.totalorder %s158, 1
          %s162 = scalar_select %p161, %s158, 1
          %s163 = smul.addr %s160, 2
          %s164 = sadd.s32 %s162, %s163
          %s165 = smul.addr %s164, 4
          %s166 = scalar_lea.vmem %s0, %s165
          %s167 = smul.u32 2, %s24
        $region24: #{tpu_custom_call.1} parent=19 // pred_fallthru
          _
      $region20: #{tpu_custom_call.1} parent=5 // pred_fallthru
        _
      %p168 = scmp.le.s32.totalorder 1, %s16
      %p169 = scmp.lt.s32.totalorder %s16, 3
      %p170 = pnand %p168, %p169
      %p171 = pneg %p170
      // Predicated region
      $region25: #{tpu_custom_call.1} parent=5 // pred_check
        _
      $region26: #{tpu_custom_call.1} parent=5 // pred_check_branch
        %173 = sbr.rel (%p170) target = $region28
      $region27: #{tpu_custom_call.1} parent=5 // pred_region
        %s174 = ssub.s32 %s16, 1
        %s175 = smul.u32 2, %s26
        %p176 = scmp.lt.s32.totalorder %s25, 1
        %s177 = scalar_select %p176, %s25, 1
        %p178 = scmp.lt.s32.totalorder %s175, 1
        %s179 = scalar_select %p178, %s175, 1
        %s180 = smul.addr %s177, 2
        %s181 = sadd.s32 %s179, %s180
        %s182 = smul.addr %s181, 4
        %s183 = scalar_lea.vmem %s0, %s182
        %p184 = pneg %p56
        %p185 = pneg %p53
        %p186 = pneg %p77
        %p187 = pneg %p74
        %p188 = pneg %p105
        %p189 = pneg %p102
        %s190 = sand.u32 %s92, 1
        %s191 = scalar_lea.sflag [#allocation3], %s190
        %s192 = sand.u32 %s92, 1
        %s193 = smul.addr %s192, 16
        %s194 = scalar_lea.vmem [#allocation2], %s193
        %p195 = pneg %p133
        %p196 = pneg %p130
        %s197 = sand.u32 %s120, 1
        %s198 = scalar_lea.sflag [#allocation5], %s197
        %s199 = sand.u32 %s120, 1
        %s200 = smul.addr %s199, 16
        %s201 = scalar_lea.vmem [#allocation4], %s200
        %s202 = smul.u32 2, %s26
        %p203 = scmp.lt.s32.totalorder %s25, 1
        %s204 = scalar_select %p203, %s25, 1
        %p205 = scmp.lt.s32.totalorder %s202, 1
        %s206 = scalar_select %p205, %s202, 1
        %s207 = smul.addr %s204, 2
        %s208 = sadd.s32 %s206, %s207
        %s209 = smul.addr %s208, 4
        %s210 = scalar_lea.vmem %s0, %s209
        %s211 = smul.u32 2, %s26
        %s212 = smul.u32 2, %s26
        %s213 = smul.u32 2, %s26
        %v214 = vld [vmem:[%s210] sm:$0xff]
        %v215 = vld [vmem:[%s1] sm:$0xff]
        %v216 = vld [vmem:[%s1 + $0x8] sm:$0xff]
        %218 = vset.pattern.permute.xlu0 0
        %219 = vperm.xlu0 %218, %v215
        %v220 = vpop.permute.xlu0 %219
        %223 = vset.pattern.permute.xlu0 0
        %224 = vperm.xlu0 %223, %v216
        %v225 = vpop.permute.xlu0 %224
        %v228 = vlaneseq
        %v229 = vshrl.u32 %v228, 7
        %v230 = vsub.s32 0, %v229
        %v231 = vrot.slane %v214, %v230
        %v232 = vlaneseq
        %v233 = vshrl.u32 %v232, 7
        %v234 = vsub.s32 4, %v233
        %v235 = vrot.slane %v214, %v234
        %v238 = vlaneseq
        %v239 = vshrl.u32 %v238, 7
        %v240 = vsub.s32 0, %v239
        %v241 = vrot.slane %v231, %v240
        %v242 = vlaneseq
        %v243 = vshrl.u32 %v242, 7
        %v244 = vsub.s32 0, %v243
        %v245 = vrot.slane %v235, %v244
        %v246 = vmul.f32 %v220, %v241
        %v247 = vmul.f32 %v220, %v245
        %v248 = vmul.f32 %v225, %v241
        %v249 = vmul.f32 %v225, %v245
        %250 = vset.pattern.permute.xlu0 1
        %251 = vperm.xlu0 %250, %v215
        %v252 = vpop.permute.xlu0 %251
        %254 = vset.pattern.permute.xlu0 1
        %255 = vperm.xlu0 %254, %v216
        %v256 = vpop.permute.xlu0 %255
        %v258 = vlaneseq
        %v259 = vshrl.u32 %v258, 7
        %v260 = vsub.s32 1, %v259
        %v261 = vrot.slane %v214, %v260
        %v262 = vlaneseq
        %v263 = vshrl.u32 %v262, 7
        %v264 = vsub.s32 5, %v263
        %v265 = vrot.slane %v214, %v264
        %v268 = vlaneseq
        %v269 = vshrl.u32 %v268, 7
        %v270 = vsub.s32 1, %v269
        %v271 = vrot.slane %v261, %v270
        %v272 = vlaneseq
        %v273 = vshrl.u32 %v272, 7
        %v274 = vsub.s32 1, %v273
        %v275 = vrot.slane %v265, %v274
        %v276 = vmul.f32 %v252, %v271
        %v277 = vmul.f32 %v252, %v275
        %v278 = vmul.f32 %v256, %v271
        %v279 = vmul.f32 %v256, %v275
        %v280 = vadd.f32 %v246, %v276
        %v281 = vadd.f32 %v247, %v277
        %v282 = vadd.f32 %v248, %v278
        %v283 = vadd.f32 %v249, %v279
        %284 = vset.pattern.permute.xlu0 2
        %285 = vperm.xlu0 %284, %v215
        %v286 = vpop.permute.xlu0 %285
        %288 = vset.pattern.permute.xlu0 2
        %289 = vperm.xlu0 %288, %v216
        %v290 = vpop.permute.xlu0 %289
        %v292 = vlaneseq
        %v293 = vshrl.u32 %v292, 7
        %v294 = vsub.s32 2, %v293
        %v295 = vrot.slane %v214, %v294
        %v296 = vlaneseq
        %v297 = vshrl.u32 %v296, 7
        %v298 = vsub.s32 6, %v297
        %v299 = vrot.slane %v214, %v298
        %v302 = vlaneseq
        %v303 = vshrl.u32 %v302, 7
        %v304 = vsub.s32 2, %v303
        %v305 = vrot.slane %v295, %v304
        %v306 = vlaneseq
        %v307 = vshrl.u32 %v306, 7
        %v308 = vsub.s32 2, %v307
        %v309 = vrot.slane %v299, %v308
        %v310 = vmul.f32 %v286, %v305
        %v311 = vmul.f32 %v286, %v309
        %v312 = vmul.f32 %v290, %v305
        %v313 = vmul.f32 %v290, %v309
        %v314 = vadd.f32 %v280, %v310
        %v315 = vadd.f32 %v281, %v311
        %v316 = vadd.f32 %v282, %v312
        %v317 = vadd.f32 %v283, %v313
        %318 = vset.pattern.permute.xlu0 3
        %319 = vperm.xlu0 %318, %v215
        %v320 = vpop.permute.xlu0 %319
        %322 = vset.pattern.permute.xlu0 3
        %323 = vperm.xlu0 %322, %v216
        %v324 = vpop.permute.xlu0 %323
        %v326 = vlaneseq
        %v327 = vshrl.u32 %v326, 7
        %v328 = vsub.s32 3, %v327
        %v329 = vrot.slane %v214, %v328
        %v330 = vlaneseq
        %v331 = vshrl.u32 %v330, 7
        %v332 = vsub.s32 7, %v331
        %v333 = vrot.slane %v214, %v332
        %v336 = vlaneseq
        %v337 = vshrl.u32 %v336, 7
        %v338 = vsub.s32 3, %v337
        %v339 = vrot.slane %v329, %v338
        %v340 = vlaneseq
        %v341 = vshrl.u32 %v340, 7
        %v342 = vsub.s32 3, %v341
        %v343 = vrot.slane %v333, %v342
        %v344 = vmul.f32 %v320, %v339
        %v345 = vmul.f32 %v320, %v343
        %v346 = vmul.f32 %v324, %v339
        %v347 = vmul.f32 %v324, %v343
        %v348 = vadd.f32 %v314, %v344
        %v349 = vadd.f32 %v315, %v345
        %v350 = vadd.f32 %v316, %v346
        %v351 = vadd.f32 %v317, %v347
        %v352 = vadd.f32 %v348, 1.0
        %v353 = vadd.f32 %v349, 1.0
        %354 = vst [vmem:[%s194] sm:$0xff] %v352
        %355 = vst [vmem:[%s194 + $0x8] sm:$0xff] %v353
        %356 = vst [vmem:[%s201] sm:$0xff] %v350
        %357 = vst [vmem:[%s201 + $0x8] sm:$0xff] %v351
        %s358 = sand.u32 %s92, 1
        %s359 = scalar_lea.sflag [#allocation3], %s358
        %s360 = sand.u32 %s92, 1
        %s361 = smul.addr %s360, 16
        %s362 = scalar_lea.vmem [#allocation2], %s361
        %s363 = sand.u32 %s120, 1
        %s364 = scalar_lea.sflag [#allocation5], %s363
        %s365 = sand.u32 %s120, 1
        %s366 = smul.addr %s365, 16
        %s367 = scalar_lea.vmem [#allocation4], %s366
        // Predicated region
        $region29: #{tpu_custom_call.1} parent=27 // pred_check
          %p368 = pneg %p102
        $region30: #{tpu_custom_call.1} parent=27 // pred_check_branch
          %370 = sbr.rel (%p368) target = $region32
        $region31: #{tpu_custom_call.1} parent=27 // pred_region
          %s371 = smul.u32 2, %s26
          %s373 = ssub.s32 256, 256
          %374 = vsyncadd %s359, %s373
          %s375 = smul.addr %s25, 2
          %s376 = sadd.s32 %s371, %s375
          %s377 = smul.addr %s376, 128
          %s378 = scalar_lea.hbm %s2, %s377
          %s380 = sshll.u32 %s362, 4
          %s381 = int_to_ptr.vmem [resolvable:$true] %s380
          %383 = dma.vmem_to_hbm [thread:$0]  %s381, 256, %s378, %s359
        $region32: #{tpu_custom_call.1} parent=27 // pred_fallthru
          _
        // Predicated region
        $region33: #{tpu_custom_call.1} parent=27 // pred_check
          %p384 = pneg %p130
        $region34: #{tpu_custom_call.1} parent=27 // pred_check_branch
          %386 = sbr.rel (%p384) target = $region36
        $region35: #{tpu_custom_call.1} parent=27 // pred_region
          %s387 = smul.u32 2, %s26
          %s389 = ssub.s32 256, 256
          %390 = vsyncadd %s364, %s389
          %s391 = smul.addr %s25, 2
          %s392 = sadd.s32 %s387, %s391
          %s393 = smul.addr %s392, 128
          %s394 = scalar_lea.hbm %s3, %s393
          %s396 = sshll.u32 %s367, 4
          %s397 = int_to_ptr.vmem [resolvable:$true] %s396
          %399 = dma.vmem_to_hbm [thread:$0]  %s397, 256, %s394, %s364
        $region36: #{tpu_custom_call.1} parent=27 // pred_fallthru
          _
      $region28: #{tpu_custom_call.1} parent=5 // pred_fallthru
        _
      %p400 = scmp.le.s32.totalorder 2, %s16
      // Predicated region
      $region37: #{tpu_custom_call.1} parent=5 // pred_check
        %p401 = pneg %p400
      $region38: #{tpu_custom_call.1} parent=5 // pred_check_branch
        %403 = sbr.rel (%p401) target = $region40
      $region39: #{tpu_custom_call.1} parent=5 // pred_region
        %s404 = ssub.s32 %s16, 2
        // Predicated region
        $region41: #{tpu_custom_call.1} parent=39 // pred_check
          %p405 = pneg %p108
        $region42: #{tpu_custom_call.1} parent=39 // pred_check_branch
          %407 = sbr.rel (%p405) target = $region44
        $region43: #{tpu_custom_call.1} parent=39 // pred_region
          %s408 = sand.u32 %s93, 1
          %s409 = scalar_lea.sflag [#allocation3], %s408
          %s410 = sand.u32 %s93, 1
          %s411 = smul.addr %s410, 16
          %s412 = scalar_lea.vmem [#allocation2], %s411
          %413 = dma.done %s409, 256
        $region44: #{tpu_custom_call.1} parent=39 // pred_fallthru
          _
        // Predicated region
        $region45: #{tpu_custom_call.1} parent=39 // pred_check
          %p414 = pneg %p136
        $region46: #{tpu_custom_call.1} parent=39 // pred_check_branch
          %416 = sbr.rel (%p414) target = $region48
        $region47: #{tpu_custom_call.1} parent=39 // pred_region
          %s417 = sand.u32 %s121, 1
          %s418 = scalar_lea.sflag [#allocation5], %s417
          %s419 = sand.u32 %s121, 1
          %s420 = smul.addr %s419, 16
          %s421 = scalar_lea.vmem [#allocation4], %s420
          %422 = dma.done %s418, 256
        $region48: #{tpu_custom_call.1} parent=39 // pred_fallthru
          _
      $region40: #{tpu_custom_call.1} parent=5 // pred_fallthru
        _
    $region6: #{tpu_custom_call.1} parent=1 // loop_footer
      %s20 = sadd.s32 1, %s16
    $region7: #{tpu_custom_call.1} parent=1 // loop_footer_branch
      %15 = sbr.rel target = $region3
    $region8: #{tpu_custom_call.1} parent=1 // loop_exit
      _
    %423 = vsyncpa [#allocation3], 1
    %s424 = scalar_lea.sflag [#allocation3], 1
    %425 = vsyncpa %s424, 1
    %426 = vsyncpa [#allocation5], 1
    %s427 = scalar_lea.sflag [#allocation5], 1
    %428 = vsyncpa %s427, 1

</llo_original>
